<compile_context>
chip_gen: v7x
topology: tpu7x:2x2x1
jax: 0.10.0
libtpu: 0.0.40
codegen_flags: <defaults>
</compile_context>

<pallas_src>
import functools

import jax
import jax.numpy as jnp
from jax.experimental import pallas as pl
from jax.experimental.pallas import tpu as pltpu


def _round_up(x, m):
    return ((x + m - 1) // m) * m


def _cdiv(a, b):
    return (a + b - 1) // b


def _classifier_kernel(B, TB, with_logits,
                       x_ref, w_ref, b_ref, lab_ref, *out_refs):
    # x_ref:   (TB, D)      native dtype (f32/bf16), streamed
    # w_ref:   (C_pad, D)   bf16, resident across the grid
    # b_ref:   (1, C_pad)   f32, padded cols = -1e30
    # lab_ref: (TB, 1)      int32
    # outputs: [logits (TB, C_pad)] , nll partial sum (1, 8, 128) f32
    if with_logits:
        logits_ref, nllsum_ref = out_refs
    else:
        (nllsum_ref,) = out_refs

    # Cast the streamed x tile to bf16 in VMEM (cheap VPU work, no extra HBM
    # pass in the wrapper).
    x = x_ref[...].astype(jnp.bfloat16)                 # (TB, D)
    w = w_ref[...]                                      # (C_pad, D) bf16
    b = b_ref[...]                                      # (1, C_pad) f32

    # MXU matmul contracting D on both operands (W consumed in its stored
    # (C, D) layout -> no XLU transpose), f32 accumulation.
    logits = jax.lax.dot_general(
        x, w,
        dimension_numbers=(((1,), (1,)), ((), ())),
        preferred_element_type=jnp.float32,
    ) + b                                               # (TB, C_pad) f32

    if with_logits:
        logits_ref[...] = logits.astype(logits_ref.dtype)

    # Numerically stable log-sum-exp in f32 (padded cols hold -1e30 -> exp 0).
    m = jnp.max(logits, axis=-1, keepdims=True)         # (TB, 1)
    lse = m + jnp.log(jnp.sum(jnp.exp(logits - m), axis=-1, keepdims=True))

    labels = lab_ref[...]                               # (TB, 1) int32
    cls_ids = jax.lax.broadcasted_iota(jnp.int32, logits.shape, 1)
    picked = jnp.sum(jnp.where(cls_ids == labels, logits, 0.0),
                     axis=-1, keepdims=True)            # (TB, 1)
    nll = lse - picked                                  # (TB, 1)

    # Mask rows beyond the real batch (ragged last tile) and reduce the whole
    # block to one scalar so the per-row NLL never hits HBM.
    row_ids = pl.program_id(0) * TB + jax.lax.broadcasted_iota(
        jnp.int32, (TB, 1), 0)
    nll = jnp.where(row_ids < B, nll, 0.0)
    block_sum = jnp.sum(nll)                            # f32 scalar
    nllsum_ref[...] = jnp.broadcast_to(block_sum, nllsum_ref.shape)


def _choose_tb(B, D, c_pad, logits_itemsize, tb_max, vmem_budget):
    """Batch-tile size: large enough to amortize per-grid-step overhead, small
    enough to fit double-buffered streams in a cross-generation VMEM budget
    (v7x has only 64 MiB physical), and >= 2 grid blocks when B allows so the
    "parallel" batch axis shards across both v7x TensorCores."""
    if B <= 8:
        return max(B, 1)
    per_row = 2 * D * 4                        # x tile (f32, double-buffered)
    per_row += 2 * c_pad * logits_itemsize     # logits tile (double-buffered)
    per_row += 2 * 128 * 4                     # labels tile (lane-padded)
    fixed = c_pad * D * 2 + c_pad * 4 + 2 * 8 * 128 * 4
    tb_fit = max(8, ((vmem_budget - fixed) // per_row) // 8 * 8)
    tb = min(tb_max, tb_fit, _round_up(B, 8))
    nb = max(2, _cdiv(B, tb))                  # prefer >= 2 blocks (megacore)
    tb = min(_round_up(_cdiv(B, nb), 8), tb)
    return max(tb, 8)


def classifier_forward(pooled_output, weight, bias, labels, *,
                       tb_max=1024, logits_dtype=jnp.float32,
                       return_logits=True, vmem_budget_bytes=24 << 20):
    """Forward pass of `Classifier` after the embedder (n_classes > 1 path).

    pooled_output: (B, D) float; weight: (C, D) f32; bias: (C,) f32;
    labels: (B,) int.  Returns (logits (B, C), loss scalar f32); pass
    return_logits=False to skip the logits HBM write when only the loss is
    consumed, or logits_dtype=jnp.bfloat16 to halve the logits write stream.
    """
    B, D = pooled_output.shape
    C = weight.shape[0]
    assert C > 1, "n_classes == 1 (MSELoss) path not implemented"

    C_pad = max(128, _round_up(C, 128))              # lane-dense logits / bias
    logits_itemsize = jnp.dtype(logits_dtype).itemsize if return_logits else 0
    TB = _choose_tb(B, D, C_pad, logits_itemsize, tb_max, vmem_budget_bytes)
    num_blocks = _cdiv(B, TB)

    # Only the (small) parameters are padded / cast in the wrapper; the
    # dominant x stream is consumed in its native dtype/shape.
    w = jnp.zeros((C_pad, D), jnp.bfloat16).at[:C].set(
        weight.astype(jnp.bfloat16))
    b2 = jnp.full((1, C_pad), -1e30, jnp.float32).at[0, :C].set(
        bias.astype(jnp.float32))
    lab = labels.reshape(B, 1).astype(jnp.int32)

    kernel = functools.partial(_classifier_kernel, B, TB, return_logits)

    out_shape = []
    out_specs = []
    if return_logits:
        out_shape.append(jax.ShapeDtypeStruct((B, C_pad), logits_dtype))
        out_specs.append(pl.BlockSpec((TB, C_pad), lambda i: (i, 0)))
    # Per-block NLL partial sums: one full (8,128) f32 vreg per block
    # (unmasked lane-dense store, ~4 KiB/block of HBM).
    out_shape.append(jax.ShapeDtypeStruct((num_blocks, 8, 128), jnp.float32))
    out_specs.append(pl.BlockSpec((1, 8, 128), lambda i: (i, 0, 0)))

    x_bytes = jnp.dtype(pooled_output.dtype).itemsize
    vmem_need = (2 * TB * D * x_bytes                  # x, double-buffered
                 + C_pad * D * 2 + C_pad * 4           # W + bias (resident)
                 + 2 * TB * 128 * 4                    # labels (lane-padded)
                 + 2 * TB * C_pad * logits_itemsize    # logits out
                 + 2 * 8 * 128 * 4)                    # nll partial sums
    vmem_limit = min(64 << 20,
                     max(16 << 20, int(vmem_need * 1.5) + (1 << 20)))

    bytes_accessed = (B * D * x_bytes + C_pad * D * 2 + C_pad * 4 + B * 4
                      + B * C_pad * logits_itemsize
                      + num_blocks * 8 * 128 * 4)
    cost = pl.CostEstimate(flops=2 * B * D * C_pad,
                           transcendentals=B * C_pad,
                           bytes_accessed=bytes_accessed)

    def run(single_buffer_weights):
        # W / bias never change across the grid; request a single VMEM buffer.
        wb_kwargs = ({"pipeline_mode": pl.Buffered(1)}
                     if single_buffer_weights else {})
        grid_spec = pltpu.PrefetchScalarGridSpec(
            num_scalar_prefetch=0,
            grid=(num_blocks,),
            in_specs=[
                pl.BlockSpec((TB, D), lambda i: (i, 0)),               # x
                pl.BlockSpec((C_pad, D), lambda i: (0, 0), **wb_kwargs),  # W
                pl.BlockSpec((1, C_pad), lambda i: (0, 0), **wb_kwargs),  # b
                pl.BlockSpec((TB, 1), lambda i: (i, 0)),               # labels
            ],
            out_specs=tuple(out_specs),
        )
        return pl.pallas_call(
            kernel,
            out_shape=tuple(out_shape),
            grid_spec=grid_spec,
            compiler_params=pltpu.CompilerParams(
                dimension_semantics=("parallel",),
                vmem_limit_bytes=vmem_limit),
            cost_estimate=cost,
        )(pooled_output, w, b2, lab)

    try:
        outs = run(True)
    except Exception:
        # Fallback for jax versions where pl.Buffered(1) (single-buffered
        # resident weights) is not accepted: default double buffering.
        outs = run(False)

    if return_logits:
        logits_p, nll_sums = outs
        logits = logits_p[:, :C]
    else:
        nll_sums = outs[0] if isinstance(outs, (list, tuple)) else outs
        logits = None

    # Mean over the real batch rows; ragged-tile rows were masked in-kernel.
    loss = jnp.sum(nll_sums[:, 0, 0]) / B
    return logits, loss


def _reference(pooled_output, weight, bias, labels):
    # Reference with the same bf16 quantization of the MXU operands.
    xb = pooled_output.astype(jnp.bfloat16).astype(jnp.float32)
    wb = weight.astype(jnp.bfloat16).astype(jnp.float32)
    logits = xb @ wb.T + bias
    logz = jax.nn.log_softmax(logits, axis=-1)
    nll = -jnp.take_along_axis(logz, labels[:, None], axis=-1)[:, 0]
    return logits, jnp.mean(nll)


if __name__ == "__main__":
    # Small shapes consistent with the module: batch=8, input_dim=32, n_classes=4
    B, D, C = 8, 32, 4
    key = jax.random.PRNGKey(0)
    kx, kw, kb, kl = jax.random.split(key, 4)

    pooled = jax.random.normal(kx, (B, D), dtype=jnp.float32)
    # Deterministic nn.Linear-style init: U(-1/sqrt(D), 1/sqrt(D))
    bound = 1.0 / (D ** 0.5)
    weight = jax.random.uniform(kw, (C, D), jnp.float32, -bound, bound)
    bias = jax.random.uniform(kb, (C,), jnp.float32, -bound, bound)
    labels = jax.random.randint(kl, (B,), 0, C, dtype=jnp.int32)

    logits, loss = classifier_forward(pooled, weight, bias, labels)
    jax.block_until_ready((logits, loss))

    ref_logits, ref_loss = _reference(pooled, weight, bias, labels)
    assert logits.shape == (B, C)
    assert jnp.allclose(logits, ref_logits, atol=1e-4, rtol=1e-4)
    assert jnp.allclose(loss, ref_loss, atol=1e-4, rtol=1e-4)

    print("KERNEL_OK")
</pallas_src>

<mosaic_0001>
module attributes {stable_mosaic.version = 11 : i64} {
  func.func @_classifier_kernel(%arg0: i32, %arg1: memref<8x32xf32, #tpu.memory_space<vmem>>, %arg2: memref<128x32xbf16, #tpu.memory_space<vmem>>, %arg3: memref<1x128xf32, #tpu.memory_space<vmem>>, %arg4: memref<8x1xi32, #tpu.memory_space<vmem>>, %arg5: memref<8x128xf32, #tpu.memory_space<vmem>>, %arg6: memref<1x8x128xf32, #tpu.memory_space<vmem>>) attributes {dimension_semantics = [#tpu.dimension_semantics<parallel>], iteration_bounds = array<i64: 1>, scalar_prefetch = 0 : i64, scratch_operands = 0 : i64, tpu.core_type = #tpu.core_type<tc>, window_params = [{transform_indices = @transform_0, window_bounds = array<i64: 8, 32>}, {pipeline_mode = #tpu.pipeline_mode<synchronous>, transform_indices = @transform_1, window_bounds = array<i64: 128, 32>}, {pipeline_mode = #tpu.pipeline_mode<synchronous>, transform_indices = @transform_2, window_bounds = array<i64: 1, 128>}, {transform_indices = @transform_3, window_bounds = array<i64: 8, 1>}, {transform_indices = @transform_4, window_bounds = array<i64: 8, 128>}, {transform_indices = @transform_5, window_bounds = array<i64: 1, 8, 128>}]} {
    %c0 = arith.constant 0 : index
    %c0_0 = arith.constant 0 : index
    %0 = vector.load %arg1[%c0, %c0_0] : memref<8x32xf32, #tpu.memory_space<vmem>>, vector<8x32xf32>
    %1 = arith.truncf %0 : vector<8x32xf32> to vector<8x32xbf16>
    %c0_1 = arith.constant 0 : index
    %c0_2 = arith.constant 0 : index
    %2 = vector.load %arg2[%c0_1, %c0_2] : memref<128x32xbf16, #tpu.memory_space<vmem>>, vector<128x32xbf16>
    %c0_3 = arith.constant 0 : index
    %c0_4 = arith.constant 0 : index
    %3 = vector.load %arg3[%c0_3, %c0_4] : memref<1x128xf32, #tpu.memory_space<vmem>>, vector<1x128xf32>
    %cst = arith.constant dense<0.000000e+00> : vector<8x128xf32>
    %4 = tpu.matmul %1, %2, %cst {dimension_numbers = #tpu.dot_dimension_numbers<[1], [1], [0], [0], [0, 0, 1, 0], [], []>} : vector<8x32xbf16>, vector<128x32xbf16>, vector<8x128xf32> -> vector<8x128xf32>
    %5 = vector.broadcast %3 : vector<1x128xf32> to vector<8x128xf32>
    %6 = arith.addf %4, %5 : vector<8x128xf32>
    %c0_5 = arith.constant 0 : index
    %c0_6 = arith.constant 0 : index
    %7 = vector.load %arg5[%c0_5, %c0_6] : memref<8x128xf32, #tpu.memory_space<vmem>>, vector<8x128xf32>
    tpu.vector_store %arg5[%c0_5, %c0_6], %6 {strides = array<i32>} : memref<8x128xf32, #tpu.memory_space<vmem>>, vector<8x128xf32>,
    %cst_7 = arith.constant dense<0xFF800000> : vector<8xf32>
    %8 = vector.multi_reduction <maximumf>, %6, %cst_7 [1] : vector<8x128xf32> to vector<8xf32>
    %9 = vector.shape_cast %8 : vector<8xf32> to vector<8x1xf32>
    %10 = vector.broadcast %9 : vector<8x1xf32> to vector<8x128xf32>
    %11 = arith.subf %6, %10 : vector<8x128xf32>
    %12 = math.exp %11 : vector<8x128xf32>
    %cst_8 = arith.constant dense<0.000000e+00> : vector<8xf32>
    %13 = vector.multi_reduction <add>, %12, %cst_8 [1] : vector<8x128xf32> to vector<8xf32>
    %14 = vector.shape_cast %13 : vector<8xf32> to vector<8x1xf32>
    %15 = math.log %14 : vector<8x1xf32>
    %16 = arith.addf %9, %15 : vector<8x1xf32>
    %c0_9 = arith.constant 0 : index
    %c0_10 = arith.constant 0 : index
    %17 = vector.load %arg4[%c0_9, %c0_10] : memref<8x1xi32, #tpu.memory_space<vmem>>, vector<8x1xi32>
    %18 = tpu.iota {dimensions = array<i32: 1>} : vector<8x128xi32>
    %19 = vector.broadcast %17 : vector<8x1xi32> to vector<8x128xi32>
    %20 = arith.cmpi eq, %18, %19 : vector<8x128xi32>
    %cst_11 = arith.constant 0.000000e+00 : f32
    %21 = vector.broadcast %cst_11 : f32 to vector<8x128xf32>
    %22 = arith.select %20, %6, %21 : vector<8x128xi1>, vector<8x128xf32>
    %cst_12 = arith.constant dense<0.000000e+00> : vector<8xf32>
    %23 = vector.multi_reduction <add>, %22, %cst_12 [1] : vector<8x128xf32> to vector<8xf32>
    %24 = vector.shape_cast %23 : vector<8xf32> to vector<8x1xf32>
    %25 = arith.subf %16, %24 : vector<8x1xf32>
    %c8_i32 = arith.constant 8 : i32
    %26 = arith.muli %arg0, %c8_i32 : i32
    %27 = tpu.iota {dimensions = array<i32: 0>} : vector<8x1xi32>
    %28 = vector.broadcast %26 : i32 to vector<8x1xi32>
    %29 = arith.addi %28, %27 : vector<8x1xi32>
    %c8_i32_13 = arith.constant 8 : i32
    %30 = vector.broadcast %c8_i32_13 : i32 to vector<8x1xi32>
    %31 = arith.cmpi slt, %29, %30 : vector<8x1xi32>
    %cst_14 = arith.constant 0.000000e+00 : f32
    %32 = vector.broadcast %cst_14 : f32 to vector<8x1xf32>
    %33 = arith.select %31, %25, %32 : vector<8x1xi1>, vector<8x1xf32>
    %34 = vector.shape_cast %33 : vector<8x1xf32> to vector<1x8x1xf32>
    %cst_15 = arith.constant dense<0.000000e+00> : vector<1xf32>
    %35 = vector.multi_reduction <add>, %34, %cst_15 [1, 2] : vector<1x8x1xf32> to vector<1xf32>
    %36 = vector.shape_cast %35 : vector<1xf32> to vector<1x1x1xf32>
    %37 = vector.extract %36[0, 0, 0] : f32 from vector<1x1x1xf32>
    %38 = vector.broadcast %37 : f32 to vector<1x8x128xf32>
    %c0_16 = arith.constant 0 : index
    %c0_17 = arith.constant 0 : index
    %c0_18 = arith.constant 0 : index
    %39 = vector.load %arg6[%c0_16, %c0_17, %c0_18] : memref<1x8x128xf32, #tpu.memory_space<vmem>>, vector<1x8x128xf32>
    tpu.vector_store %arg6[%c0_16, %c0_17, %c0_18], %38 {strides = array<i32>} : memref<1x8x128xf32, #tpu.memory_space<vmem>>, vector<1x8x128xf32>,
    return
  }
  func.func @transform_0(%arg0: i32) -> (i32, i32) {
    %c0_i32 = arith.constant 0 : i32
    %c0_i32_0 = arith.constant 0 : i32
    return %arg0, %c0_i32 : i32, i32
  }
  func.func @transform_1(%arg0: i32) -> (i32, i32) {
    %c0_i32 = arith.constant 0 : i32
    %c0_i32_0 = arith.constant 0 : i32
    %c0_i32_1 = arith.constant 0 : i32
    return %c0_i32, %c0_i32_0 : i32, i32
  }
  func.func @transform_2(%arg0: i32) -> (i32, i32) {
    %c0_i32 = arith.constant 0 : i32
    %c0_i32_0 = arith.constant 0 : i32
    %c0_i32_1 = arith.constant 0 : i32
    return %c0_i32, %c0_i32_0 : i32, i32
  }
  func.func @transform_3(%arg0: i32) -> (i32, i32) {
    %c0_i32 = arith.constant 0 : i32
    %c0_i32_0 = arith.constant 0 : i32
    return %arg0, %c0_i32 : i32, i32
  }
  func.func @transform_4(%arg0: i32) -> (i32, i32) {
    %c0_i32 = arith.constant 0 : i32
    %c0_i32_0 = arith.constant 0 : i32
    return %arg0, %c0_i32 : i32, i32
  }
  func.func @transform_5(%arg0: i32) -> (i32, i32, i32) {
    %c0_i32 = arith.constant 0 : i32
    %c0_i32_0 = arith.constant 0 : i32
    %c0_i32_1 = arith.constant 0 : i32
    return %arg0, %c0_i32, %c0_i32_0 : i32, i32, i32
  }
}

module attributes {stable_mosaic.version = 11 : i64} {
  func.func @_classifier_kernel(%arg0: i32, %arg1: memref<8x32xf32, #tpu.memory_space<vmem>>, %arg2: memref<128x32xbf16, #tpu.memory_space<vmem>>, %arg3: memref<1x128xf32, #tpu.memory_space<vmem>>, %arg4: memref<8x1xi32, #tpu.memory_space<vmem>>, %arg5: memref<8x128xf32, #tpu.memory_space<vmem>>, %arg6: memref<1x8x128xf32, #tpu.memory_space<vmem>>) attributes {dimension_semantics = [#tpu.dimension_semantics<parallel>], iteration_bounds = array<i64: 1>, scalar_prefetch = 0 : i64, scratch_operands = 0 : i64, tpu.core_type = #tpu.core_type<tc>, window_params = [{transform_indices = @transform_0, window_bounds = array<i64: 8, 32>}, {pipeline_mode = #tpu.pipeline_mode<synchronous>, transform_indices = @transform_1, window_bounds = array<i64: 128, 32>}, {pipeline_mode = #tpu.pipeline_mode<synchronous>, transform_indices = @transform_2, window_bounds = array<i64: 1, 128>}, {transform_indices = @transform_3, window_bounds = array<i64: 8, 1>}, {transform_indices = @transform_4, window_bounds = array<i64: 8, 128>}, {transform_indices = @transform_5, window_bounds = array<i64: 1, 8, 128>}]} {
    %c0 = arith.constant 0 : index
    %c0_0 = arith.constant 0 : index
    %0 = vector.load %arg1[%c0, %c0_0] : memref<8x32xf32, #tpu.memory_space<vmem>>, vector<8x32xf32>
    %1 = arith.truncf %0 : vector<8x32xf32> to vector<8x32xbf16>
    %c0_1 = arith.constant 0 : index
    %c0_2 = arith.constant 0 : index
    %2 = vector.load %arg2[%c0_1, %c0_2] : memref<128x32xbf16, #tpu.memory_space<vmem>>, vector<128x32xbf16>
    %c0_3 = arith.constant 0 : index
    %c0_4 = arith.constant 0 : index
    %3 = vector.load %arg3[%c0_3, %c0_4] : memref<1x128xf32, #tpu.memory_space<vmem>>, vector<1x128xf32>
    %cst = arith.constant dense<0.000000e+00> : vector<8x128xf32>
    %4 = tpu.matmul %1, %2, %cst {dimension_numbers = #tpu.dot_dimension_numbers<[1], [1], [0], [0], [0, 0, 1, 0], [], []>} : vector<8x32xbf16>, vector<128x32xbf16>, vector<8x128xf32> -> vector<8x128xf32>
    %5 = vector.broadcast %3 : vector<1x128xf32> to vector<8x128xf32>
    %6 = arith.addf %4, %5 : vector<8x128xf32>
    %c0_5 = arith.constant 0 : index
    %c0_6 = arith.constant 0 : index
    %7 = vector.load %arg5[%c0_5, %c0_6] : memref<8x128xf32, #tpu.memory_space<vmem>>, vector<8x128xf32>
    tpu.vector_store %arg5[%c0_5, %c0_6], %6 {strides = array<i32>} : memref<8x128xf32, #tpu.memory_space<vmem>>, vector<8x128xf32>,
    %cst_7 = arith.constant dense<0xFF800000> : vector<8xf32>
    %8 = vector.multi_reduction <maximumf>, %6, %cst_7 [1] : vector<8x128xf32> to vector<8xf32>
    %9 = vector.shape_cast %8 : vector<8xf32> to vector<8x1xf32>
    %10 = vector.broadcast %9 : vector<8x1xf32> to vector<8x128xf32>
    %11 = arith.subf %6, %10 : vector<8x128xf32>
    %12 = math.exp %11 : vector<8x128xf32>
    %cst_8 = arith.constant dense<0.000000e+00> : vector<8xf32>
    %13 = vector.multi_reduction <add>, %12, %cst_8 [1] : vector<8x128xf32> to vector<8xf32>
    %14 = vector.shape_cast %13 : vector<8xf32> to vector<8x1xf32>
    %15 = math.log %14 : vector<8x1xf32>
    %16 = arith.addf %9, %15 : vector<8x1xf32>
    %c0_9 = arith.constant 0 : index
    %c0_10 = arith.constant 0 : index
    %17 = vector.load %arg4[%c0_9, %c0_10] : memref<8x1xi32, #tpu.memory_space<vmem>>, vector<8x1xi32>
    %18 = tpu.iota {dimensions = array<i32: 1>} : vector<8x128xi32>
    %19 = vector.broadcast %17 : vector<8x1xi32> to vector<8x128xi32>
    %20 = arith.cmpi eq, %18, %19 : vector<8x128xi32>
    %cst_11 = arith.constant 0.000000e+00 : f32
    %21 = vector.broadcast %cst_11 : f32 to vector<8x128xf32>
    %22 = arith.select %20, %6, %21 : vector<8x128xi1>, vector<8x128xf32>
    %cst_12 = arith.constant dense<0.000000e+00> : vector<8xf32>
    %23 = vector.multi_reduction <add>, %22, %cst_12 [1] : vector<8x128xf32> to vector<8xf32>
    %24 = vector.shape_cast %23 : vector<8xf32> to vector<8x1xf32>
    %25 = arith.subf %16, %24 : vector<8x1xf32>
    %c8_i32 = arith.constant 8 : i32
    %26 = arith.muli %arg0, %c8_i32 : i32
    %27 = tpu.iota {dimensions = array<i32: 0>} : vector<8x1xi32>
    %28 = vector.broadcast %26 : i32 to vector<8x1xi32>
    %29 = arith.addi %28, %27 : vector<8x1xi32>
    %c8_i32_13 = arith.constant 8 : i32
    %30 = vector.broadcast %c8_i32_13 : i32 to vector<8x1xi32>
    %31 = arith.cmpi slt, %29, %30 : vector<8x1xi32>
    %cst_14 = arith.constant 0.000000e+00 : f32
    %32 = vector.broadcast %cst_14 : f32 to vector<8x1xf32>
    %33 = arith.select %31, %25, %32 : vector<8x1xi1>, vector<8x1xf32>
    %34 = vector.shape_cast %33 : vector<8x1xf32> to vector<1x8x1xf32>
    %cst_15 = arith.constant dense<0.000000e+00> : vector<1xf32>
    %35 = vector.multi_reduction <add>, %34, %cst_15 [1, 2] : vector<1x8x1xf32> to vector<1xf32>
    %36 = vector.shape_cast %35 : vector<1xf32> to vector<1x1x1xf32>
    %37 = vector.extract %36[0, 0, 0] : f32 from vector<1x1x1xf32>
    %38 = vector.broadcast %37 : f32 to vector<1x8x128xf32>
    %c0_16 = arith.constant 0 : index
    %c0_17 = arith.constant 0 : index
    %c0_18 = arith.constant 0 : index
    %39 = vector.load %arg6[%c0_16, %c0_17, %c0_18] : memref<1x8x128xf32, #tpu.memory_space<vmem>>, vector<1x8x128xf32>
    tpu.vector_store %arg6[%c0_16, %c0_17, %c0_18], %38 {strides = array<i32>} : memref<1x8x128xf32, #tpu.memory_space<vmem>>, vector<1x8x128xf32>,
    return
  }
  func.func @transform_0(%arg0: i32) -> (i32, i32) {
    %c0_i32 = arith.constant 0 : i32
    %c0_i32_0 = arith.constant 0 : i32
    return %arg0, %c0_i32 : i32, i32
  }
  func.func @transform_1(%arg0: i32) -> (i32, i32) {
    %c0_i32 = arith.constant 0 : i32
    %c0_i32_0 = arith.constant 0 : i32
    %c0_i32_1 = arith.constant 0 : i32
    return %c0_i32, %c0_i32_0 : i32, i32
  }
  func.func @transform_2(%arg0: i32) -> (i32, i32) {
    %c0_i32 = arith.constant 0 : i32
    %c0_i32_0 = arith.constant 0 : i32
    %c0_i32_1 = arith.constant 0 : i32
    return %c0_i32, %c0_i32_0 : i32, i32
  }
  func.func @transform_3(%arg0: i32) -> (i32, i32) {
    %c0_i32 = arith.constant 0 : i32
    %c0_i32_0 = arith.constant 0 : i32
    return %arg0, %c0_i32 : i32, i32
  }
  func.func @transform_4(%arg0: i32) -> (i32, i32) {
    %c0_i32 = arith.constant 0 : i32
    %c0_i32_0 = arith.constant 0 : i32
    return %arg0, %c0_i32 : i32, i32
  }
  func.func @transform_5(%arg0: i32) -> (i32, i32, i32) {
    %c0_i32 = arith.constant 0 : i32
    %c0_i32_0 = arith.constant 0 : i32
    %c0_i32_1 = arith.constant 0 : i32
    return %arg0, %c0_i32, %c0_i32_0 : i32, i32, i32
  }
}

</mosaic_0001>

<llo_original>
// kernel: tpu_custom_call.1
$region0: #{tpu_custom_call.1}
  #allocation0 [shape = 'u32[]', space=smem, size = 0x4, offset = 0x4, fixed_abs, tag = 'smem constant byte address 0x4 - core index']
  #allocation1 [shape = 'u32[144,128]{1,0:T(1,128)}', space=vmem, size = 0x12000, scoped, tag = 'internal scratch']
  %s0 = inlined_call_operand.vmem [shape: f32[8,32], index: 0, kind: input, shape index: {}]
  %s1 = inlined_call_operand.vmem [shape: bf16[128,32], index: 1, kind: input, shape index: {}]
  %s2 = inlined_call_operand.vmem [shape: f32[1,128], index: 2, kind: input, shape index: {}]
  %s3 = inlined_call_operand.vmem [shape: s32[8,1], index: 3, kind: input, shape index: {}]
  %s4 = inlined_call_operand.hbm [shape: f32[8,128], index: 4, kind: output, shape index: {0}]
  %s5 = inlined_call_operand.hbm [shape: f32[1,8,128], index: 5, kind: output, shape index: {1}]
  %6 = xla_tuple %s4, %s5
  %s7 = sld [smem:[#allocation0]]
  $region34: #{tpu_custom_call.1} parent=0
    _
  %s9 = ssub.s32 1, %s7
  %s10 = scalar_select 0, %s9, %s7
  $region1: #{tpu_custom_call.1} parent=0
    #allocation2 [shape = 'u8[4096]{0}', space=vmem, size = 0x1000, scoped, tag = 'output window, operand 0, single buffered']
    #allocation3 [shape = 's32[1]{0}', space=sflag, size = 0x4, scoped, tag = 'scoped memory for tpu_custom_call.1']
    #allocation4 [shape = 'u8[4096]{0}', space=vmem, size = 0x1000, scoped, tag = 'output window, operand 1, single buffered']
    #allocation5 [shape = 's32[1]{0}', space=sflag, size = 0x4, scoped, tag = 'scoped memory for tpu_custom_call.1']
    %11 = vsyncpa [#allocation3], 0
    %12 = vsyncpa [#allocation5], 0
    // Predicated region
    $region2: #{tpu_custom_call.1} parent=1 // pred_check
      _
    $region3: #{tpu_custom_call.1} parent=1 // pred_check_branch
      %14 = sbr.rel (0) target = $region5
    $region4: #{tpu_custom_call.1} parent=1 // pred_region
      _
    $region5: #{tpu_custom_call.1} parent=1 // pred_fallthru
      _
    // Predicated region
    $region6: #{tpu_custom_call.1} parent=1 // pred_check
      _
    $region7: #{tpu_custom_call.1} parent=1 // pred_check_branch
      %16 = sbr.rel (0) target = $region9
    $region8: #{tpu_custom_call.1} parent=1 // pred_region
      _
    $region9: #{tpu_custom_call.1} parent=1 // pred_fallthru
      _
    // Predicated region
    $region10: #{tpu_custom_call.1} parent=1 // pred_check
      _
    $region11: #{tpu_custom_call.1} parent=1 // pred_check_branch
      %18 = sbr.rel (0) target = $region13
    $region12: #{tpu_custom_call.1} parent=1 // pred_region
      _
    $region13: #{tpu_custom_call.1} parent=1 // pred_fallthru
      _
    // Predicated region
    $region14: #{tpu_custom_call.1} parent=1 // pred_check
      _
    $region15: #{tpu_custom_call.1} parent=1 // pred_check_branch
      %20 = sbr.rel (0) target = $region17
    $region16: #{tpu_custom_call.1} parent=1 // pred_region
      _
    $region17: #{tpu_custom_call.1} parent=1 // pred_fallthru
      _
    %v22 = vld [vmem:[%s0] sm:$0xff]
    %v23 = vpack.c.bf16 %v22, %v22
    %v24 = vld [vmem:[%s1] sm:$0xf]
    %v25 = vld [vmem:[%s1 + $0x4] sm:$0xf]
    %v26 = vld [vmem:[%s1 + $0x8] sm:$0xf]
    %v27 = vld [vmem:[%s1 + $0xc] sm:$0xf]
    %v28 = vld [vmem:[%s1 + $0x10] sm:$0xf]
    %v29 = vld [vmem:[%s1 + $0x14] sm:$0xf]
    %v30 = vld [vmem:[%s1 + $0x18] sm:$0xf]
    %v31 = vld [vmem:[%s1 + $0x1c] sm:$0xf]
    %v32 = vld [vmem:[%s1 + $0x20] sm:$0xf]
    %v33 = vld [vmem:[%s1 + $0x24] sm:$0xf]
    %v34 = vld [vmem:[%s1 + $0x28] sm:$0xf]
    %v35 = vld [vmem:[%s1 + $0x2c] sm:$0xf]
    %v36 = vld [vmem:[%s1 + $0x30] sm:$0xf]
    %v37 = vld [vmem:[%s1 + $0x34] sm:$0xf]
    %v38 = vld [vmem:[%s1 + $0x38] sm:$0xf]
    %v39 = vld [vmem:[%s1 + $0x3c] sm:$0xf]
    %v40 = vld [vmem:[%s2] sm:$0x1]
    %v42 = vlaneseq
    %v43 = vshrl.u32 %v42, 7
    %v44 = vsub.s32 0, %v43
    %v45 = vrot.slane %v40, %v44
    %v63 = vunpack.c.l.b16 %v24
    %v64 = vunpack.c.l.b16 %v25
    %v65 = vunpack.c.l.b16 %v26
    %v66 = vunpack.c.l.b16 %v27
    %v67 = vunpack.c.l.b16 %v28
    %v68 = vunpack.c.l.b16 %v29
    %v69 = vunpack.c.l.b16 %v30
    %v70 = vunpack.c.l.b16 %v31
    %v71 = vunpack.c.l.b16 %v32
    %v72 = vunpack.c.l.b16 %v33
    %v73 = vunpack.c.l.b16 %v34
    %v74 = vunpack.c.l.b16 %v35
    %v75 = vunpack.c.l.b16 %v36
    %v76 = vunpack.c.l.b16 %v37
    %v77 = vunpack.c.l.b16 %v38
    %v78 = vunpack.c.l.b16 %v39
    %v79 = vpack.c.b16 %v64, %v63
    %v80 = vpack.c.b16 %v66, %v65
    %v81 = vpack.c.b16 %v68, %v67
    %v82 = vpack.c.b16 %v70, %v69
    %v83 = vpack.c.b16 %v72, %v71
    %v84 = vpack.c.b16 %v74, %v73
    %v85 = vpack.c.b16 %v76, %v75
    %v86 = vpack.c.b16 %v78, %v77
    %vm87 = vcmask 261120
    %v89 = vsel %vm87, %v23, 0
    %v92 = vsel %vm87, %v79, 0
    %v95 = vsel %vm87, %v80, 0
    %v98 = vsel %vm87, %v81, 0
    %v101 = vsel %vm87, %v82, 0
    %v104 = vsel %vm87, %v83, 0
    %v107 = vsel %vm87, %v84, 0
    %v110 = vsel %vm87, %v85, 0
    %v113 = vsel %vm87, %v86, 0
    %115 = vmatprep.subr.bf16.mxu0 0
    %116 = vmatpush1.bf16.xpose.msra.mxu0 %v92
    %117 = vmatprep.subr.bf16.mxu0 0
    %118 = vmatpush1.bf16.xpose.msra.mxu0 %v95
    %119 = vmatprep.subr.bf16.mxu0 0
    %120 = vmatpush1.bf16.xpose.msra.mxu0 %v98
    %121 = vmatprep.subr.bf16.mxu0 0
    %122 = vmatpush1.bf16.xpose.msra.mxu0 %v101
    %123 = vmatprep.subr.bf16.mxu0 0
    %124 = vmatpush1.bf16.xpose.msra.mxu0 %v104
    %125 = vmatprep.subr.bf16.mxu0 0
    %126 = vmatpush1.bf16.xpose.msra.mxu0 %v107
    %127 = vmatprep.subr.bf16.mxu0 0
    %128 = vmatpush1.bf16.xpose.msra.mxu0 %v110
    %129 = vmatprep.subr.bf16.mxu0 0
    %130 = vmatpush1.bf16.xpose.msra.mxu0 %v113
    %131 = vmatprep.subr.bf16.mxu0 0
    %132 = vmatpush1.bf16.xpose.msra.mxu0 0
    %133 = vmatprep.subr.bf16.mxu0 0
    %134 = vmatpush1.bf16.xpose.msra.mxu0 0
    %135 = vmatprep.subr.bf16.mxu0 0
    %136 = vmatpush1.bf16.xpose.msra.mxu0 0
    %137 = vmatprep.subr.bf16.mxu0 0
    %138 = vmatpush1.bf16.xpose.msra.mxu0 0
    %139 = vmatprep.subr.bf16.mxu0 0
    %140 = vmatpush1.bf16.xpose.msra.mxu0 0
    %141 = vmatprep.subr.bf16.mxu0 0
    %142 = vmatpush1.bf16.xpose.msra.mxu0 0
    %143 = vmatprep.subr.bf16.mxu0 0
    %144 = vmatpush1.bf16.xpose.msra.mxu0 0
    %145 = vmatprep.subr.bf16.mxu0 0
    %146 = vmatpush1.bf16.xpose.msra.mxu0 0
    %147 = vmatprep.mubr.bf16.mxu0 0
    %148 = vmatmul.mubr.bf16.gmra.mrb[0].mxu0 %v89
    %v149 = vpop.f32.mrb[0].mxu0
    %v150 = vadd.f32 %v45, %v149
    %v151 = vpop.f32.mrb[0].mxu0
    %v152 = vpop.f32.mrb[0].mxu0
    %v153 = vpop.f32.mrb[0].mxu0
    %154 = vdwg.mxu0
    %155 = vst [vmem:[#allocation2] sm:$0xff] %v150
    %156 = vmax.xlane.f32.xlu0 %v150
    %v157 = vpop.xlane.xlu0 %156
    %v158 = vsub.f32 %v150, %v157
    %v159 = vmul.f32 %v158, 1.442695
    %v160 = vpow.pop %v159
    %161 = vadd.xlane.f32.xlu0 %v160
    %v162 = vpop.xlane.xlu0 %161
    %v163 = vlog2.pop %v162
    %v164 = vmul.f32 %v163, 0.6931472
    %v165 = vadd.f32 %v157, %v164
    %v166 = vld [vmem:[%s3] sm:$0xff]
    %v167 = vlaneseq
    %v168 = vand.u32 %v167, 127
    %169 = vset.pattern.permute.xlu0 0
    %170 = vperm.xlu0 %169, %v166
    %v171 = vpop.permute.xlu0 %170
    %vm172 = vcmp.eq.s32.totalorder %v168, %v171
    %v173 = vsel %vm172, %v150, 0.0
    %174 = vadd.xlane.f32.xlu0 %v173
    %v175 = vpop.xlane.xlu0 %174
    %v176 = vsub.f32 %v165, %v175
    %s177 = smul.u32 0, 8
    %v178 = vlaneseq
    %v179 = vshrl.u32 %v178, 7
    %v180 = vstv %s177
    %v181 = vadd.s32 %v180, %v179
    %vm182 = vcmp.lt.s32.totalorder %v181, 8
    %v183 = vsel %vm182, %v176, 0.0
    %vm184 = vcmask 7168
    %v185 = vsel %vm184, %v183, 0.0
    %186 = vadd.xlane.f32.xlu0 %v185
    %v187 = vpop.xlane.xlu0 %186
    %v188 = vrot.slane %v187, 4
    %v189 = vadd.f32 %v187, %v188
    %v190 = vrot.slane %v189, 2
    %v191 = vadd.f32 %v189, %v190
    %v192 = vrot.slane %v191, 1
    %v193 = vadd.f32 %v191, %v192
    %s194 = vtos %v193
    %v195 = vstv %s194
    %196 = vst [vmem:[#allocation4] sm:$0xff] %v195
    // Predicated region
    $region18: #{tpu_custom_call.1} parent=1 // pred_check
      _
    $region19: #{tpu_custom_call.1} parent=1 // pred_check_branch
      %198 = sbr.rel (0) target = $region21
    $region20: #{tpu_custom_call.1} parent=1 // pred_region
      %s200 = ssub.s32 128, 128
      %201 = vsyncadd [#allocation3], %s200
      %s203 = sshll.u32 [#allocation2], 4
      %s204 = int_to_ptr.vmem [resolvable:$true] %s203
      %206 = dma.vmem_to_hbm [thread:$0]  %s204, 128, %s4, [#allocation3]
    $region21: #{tpu_custom_call.1} parent=1 // pred_fallthru
      _
    // Predicated region
    $region22: #{tpu_custom_call.1} parent=1 // pred_check
      _
    $region23: #{tpu_custom_call.1} parent=1 // pred_check_branch
      %208 = sbr.rel (0) target = $region25
    $region24: #{tpu_custom_call.1} parent=1 // pred_region
      %s210 = ssub.s32 128, 128
      %211 = vsyncadd [#allocation5], %s210
      %s213 = sshll.u32 [#allocation4], 4
      %s214 = int_to_ptr.vmem [resolvable:$true] %s213
      %216 = dma.vmem_to_hbm [thread:$0]  %s214, 128, %s5, [#allocation5]
    $region25: #{tpu_custom_call.1} parent=1 // pred_fallthru
      _
    // Predicated region
    $region26: #{tpu_custom_call.1} parent=1 // pred_check
      _
    $region27: #{tpu_custom_call.1} parent=1 // pred_check_branch
      %218 = sbr.rel (0) target = $region29
    $region28: #{tpu_custom_call.1} parent=1 // pred_region
      %219 = dma.done [#allocation3], 128
    $region29: #{tpu_custom_call.1} parent=1 // pred_fallthru
      _
    // Predicated region
    $region30: #{tpu_custom_call.1} parent=1 // pred_check
      _
    $region31: #{tpu_custom_call.1} parent=1 // pred_check_branch
      %221 = sbr.rel (0) target = $region33
    $region32: #{tpu_custom_call.1} parent=1 // pred_region
      %222 = dma.done [#allocation5], 128
    $region33: #{tpu_custom_call.1} parent=1 // pred_fallthru
      _
    %223 = vsyncpa [#allocation3], 1
    %224 = vsyncpa [#allocation5], 1

// kernel: tpu_custom_call.1
$region0: #{tpu_custom_call.1}
  #allocation0 [shape = 'u32[]', space=smem, size = 0x4, offset = 0x4, fixed_abs, tag = 'smem constant byte address 0x4 - core index']
  #allocation1 [shape = 'u32[144,128]{1,0:T(1,128)}', space=vmem, size = 0x12000, scoped, tag = 'internal scratch']
  %s0 = inlined_call_operand.vmem [shape: f32[8,32], index: 0, kind: input, shape index: {}]
  %s1 = inlined_call_operand.vmem [shape: bf16[128,32], index: 1, kind: input, shape index: {}]
  %s2 = inlined_call_operand.vmem [shape: f32[1,128], index: 2, kind: input, shape index: {}]
  %s3 = inlined_call_operand.vmem [shape: s32[8,1], index: 3, kind: input, shape index: {}]
  %s4 = inlined_call_operand.hbm [shape: f32[8,128], index: 4, kind: output, shape index: {0}]
  %s5 = inlined_call_operand.hbm [shape: f32[1,8,128], index: 5, kind: output, shape index: {1}]
  %6 = xla_tuple %s4, %s5
  %s7 = sld [smem:[#allocation0]]
  $region34: #{tpu_custom_call.1} parent=0
    _
  %s9 = ssub.s32 1, %s7
  %s10 = scalar_select 0, %s9, %s7
  $region1: #{tpu_custom_call.1} parent=0
    #allocation2 [shape = 'u8[4096]{0}', space=vmem, size = 0x1000, scoped, tag = 'output window, operand 0, single buffered']
    #allocation3 [shape = 's32[1]{0}', space=sflag, size = 0x4, scoped, tag = 'scoped memory for tpu_custom_call.1']
    #allocation4 [shape = 'u8[4096]{0}', space=vmem, size = 0x1000, scoped, tag = 'output window, operand 1, single buffered']
    #allocation5 [shape = 's32[1]{0}', space=sflag, size = 0x4, scoped, tag = 'scoped memory for tpu_custom_call.1']
    %11 = vsyncpa [#allocation3], 0
    %12 = vsyncpa [#allocation5], 0
    // Predicated region
    $region2: #{tpu_custom_call.1} parent=1 // pred_check
      _
    $region3: #{tpu_custom_call.1} parent=1 // pred_check_branch
      %14 = sbr.rel (0) target = $region5
    $region4: #{tpu_custom_call.1} parent=1 // pred_region
      _
    $region5: #{tpu_custom_call.1} parent=1 // pred_fallthru
      _
    // Predicated region
    $region6: #{tpu_custom_call.1} parent=1 // pred_check
      _
    $region7: #{tpu_custom_call.1} parent=1 // pred_check_branch
      %16 = sbr.rel (0) target = $region9
    $region8: #{tpu_custom_call.1} parent=1 // pred_region
      _
    $region9: #{tpu_custom_call.1} parent=1 // pred_fallthru
      _
    // Predicated region
    $region10: #{tpu_custom_call.1} parent=1 // pred_check
      _
    $region11: #{tpu_custom_call.1} parent=1 // pred_check_branch
      %18 = sbr.rel (0) target = $region13
    $region12: #{tpu_custom_call.1} parent=1 // pred_region
      _
    $region13: #{tpu_custom_call.1} parent=1 // pred_fallthru
      _
    // Predicated region
    $region14: #{tpu_custom_call.1} parent=1 // pred_check
      _
    $region15: #{tpu_custom_call.1} parent=1 // pred_check_branch
      %20 = sbr.rel (0) target = $region17
    $region16: #{tpu_custom_call.1} parent=1 // pred_region
      _
    $region17: #{tpu_custom_call.1} parent=1 // pred_fallthru
      _
    %v22 = vld [vmem:[%s0] sm:$0xff]
    %v23 = vpack.c.bf16 %v22, %v22
    %v24 = vld [vmem:[%s1] sm:$0xf]
    %v25 = vld [vmem:[%s1 + $0x4] sm:$0xf]
    %v26 = vld [vmem:[%s1 + $0x8] sm:$0xf]
    %v27 = vld [vmem:[%s1 + $0xc] sm:$0xf]
    %v28 = vld [vmem:[%s1 + $0x10] sm:$0xf]
    %v29 = vld [vmem:[%s1 + $0x14] sm:$0xf]
    %v30 = vld [vmem:[%s1 + $0x18] sm:$0xf]
    %v31 = vld [vmem:[%s1 + $0x1c] sm:$0xf]
    %v32 = vld [vmem:[%s1 + $0x20] sm:$0xf]
    %v33 = vld [vmem:[%s1 + $0x24] sm:$0xf]
    %v34 = vld [vmem:[%s1 + $0x28] sm:$0xf]
    %v35 = vld [vmem:[%s1 + $0x2c] sm:$0xf]
    %v36 = vld [vmem:[%s1 + $0x30] sm:$0xf]
    %v37 = vld [vmem:[%s1 + $0x34] sm:$0xf]
    %v38 = vld [vmem:[%s1 + $0x38] sm:$0xf]
    %v39 = vld [vmem:[%s1 + $0x3c] sm:$0xf]
    %v40 = vld [vmem:[%s2] sm:$0x1]
    %v42 = vlaneseq
    %v43 = vshrl.u32 %v42, 7
    %v44 = vsub.s32 0, %v43
    %v45 = vrot.slane %v40, %v44
    %v63 = vunpack.c.l.b16 %v24
    %v64 = vunpack.c.l.b16 %v25
    %v65 = vunpack.c.l.b16 %v26
    %v66 = vunpack.c.l.b16 %v27
    %v67 = vunpack.c.l.b16 %v28
    %v68 = vunpack.c.l.b16 %v29
    %v69 = vunpack.c.l.b16 %v30
    %v70 = vunpack.c.l.b16 %v31
    %v71 = vunpack.c.l.b16 %v32
    %v72 = vunpack.c.l.b16 %v33
    %v73 = vunpack.c.l.b16 %v34
    %v74 = vunpack.c.l.b16 %v35
    %v75 = vunpack.c.l.b16 %v36
    %v76 = vunpack.c.l.b16 %v37
    %v77 = vunpack.c.l.b16 %v38
    %v78 = vunpack.c.l.b16 %v39
    %v79 = vpack.c.b16 %v64, %v63
    %v80 = vpack.c.b16 %v66, %v65
    %v81 = vpack.c.b16 %v68, %v67
    %v82 = vpack.c.b16 %v70, %v69
    %v83 = vpack.c.b16 %v72, %v71
    %v84 = vpack.c.b16 %v74, %v73
    %v85 = vpack.c.b16 %v76, %v75
    %v86 = vpack.c.b16 %v78, %v77
    %vm87 = vcmask 261120
    %v89 = vsel %vm87, %v23, 0
    %v92 = vsel %vm87, %v79, 0
    %v95 = vsel %vm87, %v80, 0
    %v98 = vsel %vm87, %v81, 0
    %v101 = vsel %vm87, %v82, 0
    %v104 = vsel %vm87, %v83, 0
    %v107 = vsel %vm87, %v84, 0
    %v110 = vsel %vm87, %v85, 0
    %v113 = vsel %vm87, %v86, 0
    %115 = vmatprep.subr.bf16.mxu0 0
    %116 = vmatpush1.bf16.xpose.msra.mxu0 %v92
    %117 = vmatprep.subr.bf16.mxu0 0
    %118 = vmatpush1.bf16.xpose.msra.mxu0 %v95
    %119 = vmatprep.subr.bf16.mxu0 0
    %120 = vmatpush1.bf16.xpose.msra.mxu0 %v98
    %121 = vmatprep.subr.bf16.mxu0 0
    %122 = vmatpush1.bf16.xpose.msra.mxu0 %v101
    %123 = vmatprep.subr.bf16.mxu0 0
    %124 = vmatpush1.bf16.xpose.msra.mxu0 %v104
    %125 = vmatprep.subr.bf16.mxu0 0
    %126 = vmatpush1.bf16.xpose.msra.mxu0 %v107
    %127 = vmatprep.subr.bf16.mxu0 0
    %128 = vmatpush1.bf16.xpose.msra.mxu0 %v110
    %129 = vmatprep.subr.bf16.mxu0 0
    %130 = vmatpush1.bf16.xpose.msra.mxu0 %v113
    %131 = vmatprep.subr.bf16.mxu0 0
    %132 = vmatpush1.bf16.xpose.msra.mxu0 0
    %133 = vmatprep.subr.bf16.mxu0 0
    %134 = vmatpush1.bf16.xpose.msra.mxu0 0
    %135 = vmatprep.subr.bf16.mxu0 0
    %136 = vmatpush1.bf16.xpose.msra.mxu0 0
    %137 = vmatprep.subr.bf16.mxu0 0
    %138 = vmatpush1.bf16.xpose.msra.mxu0 0
    %139 = vmatprep.subr.bf16.mxu0 0
    %140 = vmatpush1.bf16.xpose.msra.mxu0 0
    %141 = vmatprep.subr.bf16.mxu0 0
    %142 = vmatpush1.bf16.xpose.msra.mxu0 0
    %143 = vmatprep.subr.bf16.mxu0 0
    %144 = vmatpush1.bf16.xpose.msra.mxu0 0
    %145 = vmatprep.subr.bf16.mxu0 0
    %146 = vmatpush1.bf16.xpose.msra.mxu0 0
    %147 = vmatprep.mubr.bf16.mxu0 0
    %148 = vmatmul.mubr.bf16.gmra.mrb[0].mxu0 %v89
    %v149 = vpop.f32.mrb[0].mxu0
    %v150 = vadd.f32 %v45, %v149
    %v151 = vpop.f32.mrb[0].mxu0
    %v152 = vpop.f32.mrb[0].mxu0
    %v153 = vpop.f32.mrb[0].mxu0
    %154 = vdwg.mxu0
    %155 = vst [vmem:[#allocation2] sm:$0xff] %v150
    %156 = vmax.xlane.f32.xlu0 %v150
    %v157 = vpop.xlane.xlu0 %156
    %v158 = vsub.f32 %v150, %v157
    %v159 = vmul.f32 %v158, 1.442695
    %v160 = vpow.pop %v159
    %161 = vadd.xlane.f32.xlu0 %v160
    %v162 = vpop.xlane.xlu0 %161
    %v163 = vlog2.pop %v162
    %v164 = vmul.f32 %v163, 0.6931472
    %v165 = vadd.f32 %v157, %v164
    %v166 = vld [vmem:[%s3] sm:$0xff]
    %v167 = vlaneseq
    %v168 = vand.u32 %v167, 127
    %169 = vset.pattern.permute.xlu0 0
    %170 = vperm.xlu0 %169, %v166
    %v171 = vpop.permute.xlu0 %170
    %vm172 = vcmp.eq.s32.totalorder %v168, %v171
    %v173 = vsel %vm172, %v150, 0.0
    %174 = vadd.xlane.f32.xlu0 %v173
    %v175 = vpop.xlane.xlu0 %174
    %v176 = vsub.f32 %v165, %v175
    %s177 = smul.u32 0, 8
    %v178 = vlaneseq
    %v179 = vshrl.u32 %v178, 7
    %v180 = vstv %s177
    %v181 = vadd.s32 %v180, %v179
    %vm182 = vcmp.lt.s32.totalorder %v181, 8
    %v183 = vsel %vm182, %v176, 0.0
    %vm184 = vcmask 7168
    %v185 = vsel %vm184, %v183, 0.0
    %186 = vadd.xlane.f32.xlu0 %v185
    %v187 = vpop.xlane.xlu0 %186
    %v188 = vrot.slane %v187, 4
    %v189 = vadd.f32 %v187, %v188
    %v190 = vrot.slane %v189, 2
    %v191 = vadd.f32 %v189, %v190
    %v192 = vrot.slane %v191, 1
    %v193 = vadd.f32 %v191, %v192
    %s194 = vtos %v193
    %v195 = vstv %s194
    %196 = vst [vmem:[#allocation4] sm:$0xff] %v195
    // Predicated region
    $region18: #{tpu_custom_call.1} parent=1 // pred_check
      _
    $region19: #{tpu_custom_call.1} parent=1 // pred_check_branch
      %198 = sbr.rel (0) target = $region21
    $region20: #{tpu_custom_call.1} parent=1 // pred_region
      %s200 = ssub.s32 128, 128
      %201 = vsyncadd [#allocation3], %s200
      %s203 = sshll.u32 [#allocation2], 4
      %s204 = int_to_ptr.vmem [resolvable:$true] %s203
      %206 = dma.vmem_to_hbm [thread:$0]  %s204, 128, %s4, [#allocation3]
    $region21: #{tpu_custom_call.1} parent=1 // pred_fallthru
      _
    // Predicated region
    $region22: #{tpu_custom_call.1} parent=1 // pred_check
      _
    $region23: #{tpu_custom_call.1} parent=1 // pred_check_branch
      %208 = sbr.rel (0) target = $region25
    $region24: #{tpu_custom_call.1} parent=1 // pred_region
      %s210 = ssub.s32 128, 128
      %211 = vsyncadd [#allocation5], %s210
      %s213 = sshll.u32 [#allocation4], 4
      %s214 = int_to_ptr.vmem [resolvable:$true] %s213
      %216 = dma.vmem_to_hbm [thread:$0]  %s214, 128, %s5, [#allocation5]
    $region25: #{tpu_custom_call.1} parent=1 // pred_fallthru
      _
    // Predicated region
    $region26: #{tpu_custom_call.1} parent=1 // pred_check
      _
    $region27: #{tpu_custom_call.1} parent=1 // pred_check_branch
      %218 = sbr.rel (0) target = $region29
    $region28: #{tpu_custom_call.1} parent=1 // pred_region
      %219 = dma.done [#allocation3], 128
    $region29: #{tpu_custom_call.1} parent=1 // pred_fallthru
      _
    // Predicated region
    $region30: #{tpu_custom_call.1} parent=1 // pred_check
      _
    $region31: #{tpu_custom_call.1} parent=1 // pred_check_branch
      %221 = sbr.rel (0) target = $region33
    $region32: #{tpu_custom_call.1} parent=1 // pred_region
      %222 = dma.done [#allocation5], 128
    $region33: #{tpu_custom_call.1} parent=1 // pred_fallthru
      _
    %223 = vsyncpa [#allocation3], 1
    %224 = vsyncpa [#allocation5], 1

</llo_original>
